<compile_context>
chip_gen: v6e
topology: v6e:2x2x1
jax: 0.10.0
libtpu: 0.0.40
codegen_flags: <defaults>
</compile_context>

<pallas_src>
import jax
import jax.numpy as jnp
from jax import lax
from jax.experimental import pallas as pl
from jax.experimental.pallas import tpu as pltpu


# ----------------------------- kernels -------------------------------------

def _linear_kernel(x_ref, w_ref, b_ref, y_ref):
    # y = x @ W + b  (single MXU matmul, f32 accumulate, f32 epilogue)
    acc = jnp.dot(x_ref[...], w_ref[...], preferred_element_type=jnp.float32)
    acc = acc + b_ref[...].astype(jnp.float32)
    y_ref[...] = acc.astype(y_ref.dtype)


def _prob_fused_kernel(x_ref, w_ref, b_ref, o_ref):
    # w/b columns are pre-interleaved: even lanes -> mu, odd lanes -> log-sigma.
    # One fused matmul; exp() applied only to the odd (sigma) lanes, so the
    # kernel emits the final interleaved (mu, sigma) layout directly.
    z = jnp.dot(x_ref[...], w_ref[...], preferred_element_type=jnp.float32)
    z = z + b_ref[...].astype(jnp.float32)
    lane = lax.broadcasted_iota(jnp.int32, z.shape, 1)
    is_sigma = (lane % 2) == 1
    # Guard the exp argument so large mu logits (or garbage rows in a masked
    # edge block) never overflow inside the discarded branch of the select.
    sig = jnp.exp(jnp.where(is_sigma, z, 0.0))
    o_ref[...] = jnp.where(is_sigma, sig, z).astype(o_ref.dtype)


# ----------------------------- tiling --------------------------------------

def _round_up(n, m):
    return ((n + m - 1) // m) * m


def _pad_lanes(n):
    return _round_up(n, 128)


def _sublane_align(dtype):
    # Rows per packed sublane group: 8 (f32), 16 (bf16), 32 (int8/fp8).
    return max(8, 32 // jnp.dtype(dtype).itemsize)


def _batch_tile(B, F, N_out, dtype, *, vmem_limit_bytes, max_rows=None):
    """Pick the batch tile from VMEM math (lane padding + double buffering)."""
    align = _sublane_align(dtype)
    itemsize = jnp.dtype(dtype).itemsize
    # Per-row VMEM bytes of the two pipelined streams (x and out).  The narrow
    # last dims pad up to full 128-lane tiles; each stream is double-buffered.
    row_bytes = (_pad_lanes(F) + _pad_lanes(N_out)) * itemsize * 2
    budget = int(vmem_limit_bytes * 0.75)     # headroom for resident w/b etc.
    tb = max(align, (budget // row_bytes) // align * align)
    tb = min(tb, 16384)                       # practical ceiling
    if max_rows is not None:
        tb = min(tb, _round_up(max_rows, align))
    tb = min(tb, _round_up(B, align))         # never tile past the batch
    # Keep >= 2 grid steps whenever the batch is big enough to split, so the
    # "parallel" axis can shard across v7x's 2 TensorCores.
    if B > 2 * align and pl.cdiv(B, tb) < 2:
        tb = max(align, _round_up(pl.cdiv(B, 2), align))
    return tb


# ----------------------------- core call -----------------------------------

def _forward(x, w, b, *, prob, max_rows=None, vmem_limit_bytes=32 * 1024 * 1024):
    """x: (B, F), w: (F, N), b: (N,) or (1, N) -> (B, N)."""
    B, F = x.shape
    N = w.shape[1]
    b2 = jnp.reshape(b, (1, N))
    tb = _batch_tile(B, F, N, x.dtype,
                     vmem_limit_bytes=vmem_limit_bytes, max_rows=max_rows)
    itemsize = jnp.dtype(x.dtype).itemsize
    cost = pl.CostEstimate(
        flops=2 * B * F * N,
        transcendentals=(B * N) if prob else 0,
        bytes_accessed=(B * F + F * N + N + B * N) * itemsize,
    )
    kernel = _prob_fused_kernel if prob else _linear_kernel
    return pl.pallas_call(
        kernel,
        out_shape=jax.ShapeDtypeStruct((B, N), x.dtype),
        grid_spec=pltpu.PrefetchScalarGridSpec(
            num_scalar_prefetch=0,
            grid=(pl.cdiv(B, tb),),
            in_specs=[
                pl.BlockSpec((tb, F), lambda i: (i, 0)),   # pipelined x tiles
                pl.BlockSpec((F, N), lambda i: (0, 0)),    # resident weight
                pl.BlockSpec((1, N), lambda i: (0, 0)),    # resident bias
            ],
            out_specs=pl.BlockSpec((tb, N), lambda i: (i, 0)),
        ),
        compiler_params=pltpu.CompilerParams(
            dimension_semantics=("parallel",),
            vmem_limit_bytes=vmem_limit_bytes,
        ),
        cost_estimate=cost,
    )(x, w, b2)


# ----------------------- parameter packing helpers --------------------------

def fuse_prob_params(w_mu, b_mu, w_sigma, b_sigma):
    """Column-interleave mu/sigma into one linear (column 2k=mu_k, 2k+1=sigma_k)."""
    F, O = w_mu.shape
    w_cat = jnp.stack([w_mu, w_sigma], axis=2).reshape(F, 2 * O)
    b_cat = jnp.stack([b_mu.reshape(-1), b_sigma.reshape(-1)], axis=1).reshape(1, 2 * O)
    return w_cat, b_cat


def pack_classification_ensemble(w_list, b_list):
    """E members' (F, O)/(O,) -> (F, E*O), (1, E*O); member e = lanes [e*O,(e+1)*O)."""
    w_cat = jnp.concatenate(list(w_list), axis=1)
    b_cat = jnp.concatenate([jnp.reshape(b, (-1,)) for b in b_list]).reshape(1, -1)
    return w_cat, b_cat


def pack_prob_ensemble(param_list):
    """E members' (w_mu, b_mu, w_sigma, b_sigma) -> one (F, E*2*O) fused linear."""
    fused = [fuse_prob_params(*p) for p in param_list]
    w_cat = jnp.concatenate([w for w, _ in fused], axis=1)
    b_cat = jnp.concatenate([b for _, b in fused], axis=1)
    return w_cat, b_cat


# ----------------------------- wrappers ------------------------------------

def learning_machine_classification(x, w, b, **kw):
    """Single member, task='classification': (B, F) -> (B, O, 1)."""
    y = _forward(x, w, b, prob=False, **kw)
    return y[:, :, None]                       # unsqueeze(dim=2), zero-copy


def learning_machine_prob_forecasting(x, w_cat, b_cat, **kw):
    """Single member, task='probabilistic_forecasting': (B, F) -> (B, O, 2)."""
    B = x.shape[0]
    O = w_cat.shape[1] // 2
    z = _forward(x, w_cat, b_cat, prob=True, **kw)
    # Interleaved (mu, sigma) already has torch.stack(dim=2) memory layout.
    return z.reshape(B, O, 2)


def gdu_ensemble_classification(x, w_cat, b_cat, num_members, **kw):
    """All E classification members in ONE pallas_call: (B, F) -> (B, E, O, 1)."""
    B = x.shape[0]
    O = w_cat.shape[1] // num_members
    y = _forward(x, w_cat, b_cat, prob=False, **kw)
    return y.reshape(B, num_members, O)[..., None]


def gdu_ensemble_prob_forecasting(x, w_cat, b_cat, num_members, **kw):
    """All E probabilistic members in ONE pallas_call: (B, F) -> (B, E, O, 2)."""
    B = x.shape[0]
    O = w_cat.shape[1] // (2 * num_members)
    z = _forward(x, w_cat, b_cat, prob=True, **kw)
    return z.reshape(B, num_members, O, 2)


# ----------------------------- reference -----------------------------------

def _ref_classification(x, w, b):
    return (x @ w + b)[:, :, None]


def _ref_prob(x, w_mu, b_mu, w_sigma, b_sigma):
    mu = x @ w_mu + b_mu
    sigma = jnp.exp(x @ w_sigma + b_sigma)
    return jnp.stack([mu, sigma], axis=2)


# ------------------------------- main --------------------------------------

if __name__ == "__main__":
    key = jax.random.PRNGKey(0)
    B, F, O = 200, 32, 16          # batch, feature_vector_size, output_size
    E_CLS, E_PROB = 8, 4           # 8*16 = 128 lanes ; 4*2*16 = 128 lanes

    bound = 1.0 / jnp.sqrt(jnp.float32(F))

    def uniform(k, shape):
        return jax.random.uniform(k, shape, jnp.float32, -bound, bound)

    k_x, k_cls, k_prob = jax.random.split(key, 3)
    x = jax.random.normal(k_x, (B, F), dtype=jnp.float32)

    # PyTorch-style init; weights stored as (F, O) = nn.Linear weight.T.
    cls_keys = jax.random.split(k_cls, 2 * E_CLS)
    cls_params = [(uniform(cls_keys[2 * e], (F, O)),
                   uniform(cls_keys[2 * e + 1], (O,))) for e in range(E_CLS)]
    prob_keys = jax.random.split(k_prob, 4 * E_PROB)
    prob_params = [(uniform(prob_keys[4 * e + 0], (F, O)),
                    uniform(prob_keys[4 * e + 1], (O,)),
                    uniform(prob_keys[4 * e + 2], (F, O)),
                    uniform(prob_keys[4 * e + 3], (O,))) for e in range(E_PROB)]

    # ---- task == 'classification', single member (f32) ----
    w, b = cls_params[0]
    y_cls = jax.block_until_ready(learning_machine_classification(x, w, b))
    assert y_cls.shape == (B, O, 1)
    ref_cls = _ref_classification(x, w, b)
    assert jnp.allclose(y_cls, ref_cls, atol=1e-5, rtol=1e-5)

    # ---- task == 'probabilistic_forecasting', single member (f32) ----
    w_mu, b_mu, w_sigma, b_sigma = prob_params[0]
    w_f, b_f = fuse_prob_params(w_mu, b_mu, w_sigma, b_sigma)
    y_prob = jax.block_until_ready(learning_machine_prob_forecasting(x, w_f, b_f))
    assert y_prob.shape == (B, O, 2)
    ref_prob = _ref_prob(x, w_mu, b_mu, w_sigma, b_sigma)
    assert jnp.allclose(y_prob, ref_prob, atol=1e-5, rtol=1e-5)

    # ---- whole ensemble, lane-packed to 128 lanes, ONE pallas_call ----
    wc, bc = pack_classification_ensemble([p[0] for p in cls_params],
                                          [p[1] for p in cls_params])
    y_ens = jax.block_until_ready(gdu_ensemble_classification(x, wc, bc, E_CLS))
    assert y_ens.shape == (B, E_CLS, O, 1)
    for e, (we, be) in enumerate(cls_params):
        assert jnp.allclose(y_ens[:, e], _ref_classification(x, we, be),
                            atol=1e-5, rtol=1e-5)

    wp, bp = pack_prob_ensemble(prob_params)
    y_ens_p = jax.block_until_ready(gdu_ensemble_prob_forecasting(x, wp, bp, E_PROB))
    assert y_ens_p.shape == (B, E_PROB, O, 2)
    for e, pe in enumerate(prob_params):
        assert jnp.allclose(y_ens_p[:, e], _ref_prob(x, *pe), atol=1e-5, rtol=1e-5)

    # ---- bf16 storage path: bf16 in, f32 accumulate + f32 epilogue ----
    xb = x.astype(jnp.bfloat16)
    y_cls_bf16 = jax.block_until_ready(
        learning_machine_classification(
            xb, w.astype(jnp.bfloat16), b.astype(jnp.bfloat16)))
    assert y_cls_bf16.shape == (B, O, 1)
    assert jnp.allclose(y_cls_bf16.astype(jnp.float32), ref_cls, atol=0.1, rtol=0.1)

    y_prob_bf16 = jax.block_until_ready(
        learning_machine_prob_forecasting(
            xb, w_f.astype(jnp.bfloat16), b_f.astype(jnp.bfloat16)))
    assert y_prob_bf16.shape == (B, O, 2)
    assert jnp.allclose(y_prob_bf16.astype(jnp.float32), ref_prob, atol=0.1, rtol=0.1)

    print("KERNEL_OK")
</pallas_src>

<mosaic_0001>
module attributes {stable_mosaic.version = 11 : i64} {
  func.func @_linear_kernel(%arg0: i32, %arg1: memref<104x32xf32, #tpu.memory_space<vmem>>, %arg2: memref<32x16xf32, #tpu.memory_space<vmem>>, %arg3: memref<1x16xf32, #tpu.memory_space<vmem>>, %arg4: memref<104x16xf32, #tpu.memory_space<vmem>>) attributes {dimension_semantics = [#tpu.dimension_semantics<parallel>], iteration_bounds = array<i64: 2>, scalar_prefetch = 0 : i64, scratch_operands = 0 : i64, tpu.core_type = #tpu.core_type<tc>, window_params = [{transform_indices = @transform_0, window_bounds = array<i64: 104, 32>}, {pipeline_mode = #tpu.pipeline_mode<synchronous>, transform_indices = @transform_1, window_bounds = array<i64: 32, 16>}, {pipeline_mode = #tpu.pipeline_mode<synchronous>, transform_indices = @transform_2, window_bounds = array<i64: 1, 16>}, {transform_indices = @transform_3, window_bounds = array<i64: 104, 16>}]} {
    %c0 = arith.constant 0 : index
    %c0_0 = arith.constant 0 : index
    %0 = vector.load %arg1[%c0, %c0_0] : memref<104x32xf32, #tpu.memory_space<vmem>>, vector<104x32xf32>
    %c0_1 = arith.constant 0 : index
    %c0_2 = arith.constant 0 : index
    %1 = vector.load %arg2[%c0_1, %c0_2] : memref<32x16xf32, #tpu.memory_space<vmem>>, vector<32x16xf32>
    %cst = arith.constant dense<0.000000e+00> : vector<104x16xf32>
    %2 = tpu.matmul %0, %1, %cst {dimension_numbers = #tpu.dot_dimension_numbers<[1], [0], [0], [1], [0, 0, 1, 1], [], []>} : vector<104x32xf32>, vector<32x16xf32>, vector<104x16xf32> -> vector<104x16xf32>
    %c0_3 = arith.constant 0 : index
    %c0_4 = arith.constant 0 : index
    %3 = vector.load %arg3[%c0_3, %c0_4] : memref<1x16xf32, #tpu.memory_space<vmem>>, vector<1x16xf32>
    %4 = vector.broadcast %3 : vector<1x16xf32> to vector<104x16xf32>
    %5 = arith.addf %2, %4 : vector<104x16xf32>
    %c0_5 = arith.constant 0 : index
    %c0_6 = arith.constant 0 : index
    %6 = vector.load %arg4[%c0_5, %c0_6] : memref<104x16xf32, #tpu.memory_space<vmem>>, vector<104x16xf32>
    tpu.vector_store %arg4[%c0_5, %c0_6], %5 {strides = array<i32>} : memref<104x16xf32, #tpu.memory_space<vmem>>, vector<104x16xf32>,
    return
  }
  func.func @transform_0(%arg0: i32) -> (i32, i32) {
    %c0_i32 = arith.constant 0 : i32
    %c0_i32_0 = arith.constant 0 : i32
    return %arg0, %c0_i32 : i32, i32
  }
  func.func @transform_1(%arg0: i32) -> (i32, i32) {
    %c0_i32 = arith.constant 0 : i32
    %c0_i32_0 = arith.constant 0 : i32
    %c0_i32_1 = arith.constant 0 : i32
    return %c0_i32, %c0_i32_0 : i32, i32
  }
  func.func @transform_2(%arg0: i32) -> (i32, i32) {
    %c0_i32 = arith.constant 0 : i32
    %c0_i32_0 = arith.constant 0 : i32
    %c0_i32_1 = arith.constant 0 : i32
    return %c0_i32, %c0_i32_0 : i32, i32
  }
  func.func @transform_3(%arg0: i32) -> (i32, i32) {
    %c0_i32 = arith.constant 0 : i32
    %c0_i32_0 = arith.constant 0 : i32
    return %arg0, %c0_i32 : i32, i32
  }
}

</mosaic_0001>

<llo_original>
// kernel: tpu_custom_call.1
$region0: #{tpu_custom_call.1}
  #allocation0 [shape = 'u32[]', space=smem, size = 0x4, offset = 0x4, fixed_abs, tag = 'smem constant byte address 0x4 - core index']
  #allocation1 [shape = 'u32[144,128]{1,0:T(1,128)}', space=vmem, size = 0x12000, scoped, tag = 'internal scratch']
  %s0 = inlined_call_operand.vmem [shape: f32[200,32], index: 0, kind: input, shape index: {}]
  %s1 = inlined_call_operand.vmem [shape: f32[32,16], index: 1, kind: input, shape index: {}]
  %s2 = inlined_call_operand.vmem [shape: f32[1,16], index: 2, kind: input, shape index: {}]
  %s3 = inlined_call_operand.vmem [shape: f32[200,16], index: 3, kind: output, shape index: {}]
  %s4 = sld [smem:[#allocation0]]
  $region93: #{tpu_custom_call.1} parent=0
    _
  %s6 = ssub.s32 1, %s4
  %s7 = scalar_select 0, %s6, %s4
  $region1: #{tpu_custom_call.1} parent=0
    #allocation2 [shape = 'u8[106496]{0}', space=vmem, size = 0x1a000, scoped, tag = 'output window, operand 0']
    loop: start=0, step=1, limit=4
    $region2: #{tpu_custom_call.1} parent=1 // loop_pre_header
      _
    $region3: #{tpu_custom_call.1} parent=1 // loop_header
      %s9 = sphi 0, %s13
      %p10 = scmp.ge.s32.totalorder %s9, 4
      %s19 = sphi 0, %s21
      %s22 = sphi 0, %s19
      %s23 = sphi 0, %s22
      %s39 = sphi 0, %s23
      %s43 = sphi 0, %s43
      %s45 = sphi 0, %s43
      %s46 = sphi 0, %s45
      %s60 = sphi 0, %s46
      %s64 = sphi 0, %s64
      %s66 = sphi 0, %s64
      %s67 = sphi 0, %s66
      %s81 = sphi 0, %s67
      %s87 = sphi 0, %s89
      %s90 = sphi 0, %s87
      %s91 = sphi 0, %s90
      %s107 = sphi 0, %s91
    $region4: #{tpu_custom_call.1} parent=1 // loop_header_branch
      %12 = sbr.rel (%p10) target = $region8
    $region5: #{tpu_custom_call.1} parent=1 // loop_body
      %s14 = ssub.s32 %s9, 1
      %s15 = ssub.s32 %s9, 2
      %s16 = sadd.s32 %s9, 1
      %s17 = ssub.s32 %s9, %s16
      %p18 = scmp.eq.s32.totalorder %s17, 0
      %s20 = sadd.s32 %s19, 1
      %s21 = scalar_select %p18, %s19, %s20
      %p24 = pneg %p18
      %p25 = scmp.eq.s32.totalorder %s9, 1
      %p26 = por %p24, %p25
      %p27 = scmp.ne.s32.totalorder %s19, %s22
      %p28 = scmp.eq.s32.totalorder %s9, 0
      %p29 = por %p27, %p28
      %p30 = scmp.ne.s32.totalorder %s19, %s22
      %p31 = scmp.eq.s32.totalorder %s14, 1
      %p32 = por %p30, %p31
      %p33 = scmp.ne.s32.totalorder %s22, %s23
      %p34 = scmp.eq.s32.totalorder %s14, 0
      %p35 = por %p33, %p34
      %p36 = scmp.ne.s32.totalorder %s22, %s23
      %p37 = scmp.eq.s32.totalorder %s15, 1
      %p38 = por %p36, %p37
      %p40 = scmp.ne.s32.totalorder %s23, %s39
      %p41 = scmp.eq.s32.totalorder %s15, 0
      %p42 = por %p40, %p41
      %s44 = sadd.s32 %s43, 1
      %p47 = scmp.eq.s32.totalorder %s9, 1
      %p48 = scmp.ne.s32.totalorder %s43, %s45
      %p49 = scmp.eq.s32.totalorder %s9, 0
      %p50 = por %p48, %p49
      %p51 = scmp.ne.s32.totalorder %s43, %s45
      %p52 = scmp.eq.s32.totalorder %s14, 1
      %p53 = por %p51, %p52
      %p54 = scmp.ne.s32.totalorder %s45, %s46
      %p55 = scmp.eq.s32.totalorder %s14, 0
      %p56 = por %p54, %p55
      %p57 = scmp.ne.s32.totalorder %s45, %s46
      %p58 = scmp.eq.s32.totalorder %s15, 1
      %p59 = por %p57, %p58
      %p61 = scmp.ne.s32.totalorder %s46, %s60
      %p62 = scmp.eq.s32.totalorder %s15, 0
      %p63 = por %p61, %p62
      %s65 = sadd.s32 %s64, 1
      %p68 = scmp.eq.s32.totalorder %s9, 1
      %p69 = scmp.ne.s32.totalorder %s64, %s66
      %p70 = scmp.eq.s32.totalorder %s9, 0
      %p71 = por %p69, %p70
      %p72 = scmp.ne.s32.totalorder %s64, %s66
      %p73 = scmp.eq.s32.totalorder %s14, 1
      %p74 = por %p72, %p73
      %p75 = scmp.ne.s32.totalorder %s66, %s67
      %p76 = scmp.eq.s32.totalorder %s14, 0
      %p77 = por %p75, %p76
      %p78 = scmp.ne.s32.totalorder %s66, %s67
      %p79 = scmp.eq.s32.totalorder %s15, 1
      %p80 = por %p78, %p79
      %p82 = scmp.ne.s32.totalorder %s67, %s81
      %p83 = scmp.eq.s32.totalorder %s15, 0
      %p84 = por %p82, %p83
      %s85 = ssub.s32 %s9, %s16
      %p86 = scmp.eq.s32.totalorder %s85, 0
      %s88 = sadd.s32 %s87, 1
      %s89 = scalar_select %p86, %s87, %s88
      %p92 = pneg %p86
      %p93 = scmp.eq.s32.totalorder %s9, 1
      %p94 = por %p92, %p93
      %p95 = scmp.ne.s32.totalorder %s87, %s90
      %p96 = scmp.eq.s32.totalorder %s9, 0
      %p97 = por %p95, %p96
      %p98 = scmp.ne.s32.totalorder %s87, %s90
      %p99 = scmp.eq.s32.totalorder %s14, 1
      %p100 = por %p98, %p99
      %p101 = scmp.ne.s32.totalorder %s90, %s91
      %p102 = scmp.eq.s32.totalorder %s14, 0
      %p103 = por %p101, %p102
      %p104 = scmp.ne.s32.totalorder %s90, %s91
      %p105 = scmp.eq.s32.totalorder %s15, 1
      %p106 = por %p104, %p105
      %p108 = scmp.ne.s32.totalorder %s91, %s107
      %p109 = scmp.eq.s32.totalorder %s15, 0
      %p110 = por %p108, %p109
      %p111 = scmp.le.s32.totalorder 1, %s9
      %p112 = scmp.lt.s32.totalorder %s9, 3
      %p113 = pnand %p111, %p112
      %p114 = pneg %p113
      // Predicated region
      $region9: #{tpu_custom_call.1} parent=5 // pred_check
        _
      $region10: #{tpu_custom_call.1} parent=5 // pred_check_branch
        %116 = sbr.rel (%p113) target = $region12
      $region11: #{tpu_custom_call.1} parent=5 // pred_region
        %s117 = ssub.s32 %s9, 1
        // Predicated region
        $region13: #{tpu_custom_call.1} parent=11 // pred_check
          %p118 = pneg %p56
        $region14: #{tpu_custom_call.1} parent=11 // pred_check_branch
          %120 = sbr.rel (%p118) target = $region16
        $region15: #{tpu_custom_call.1} parent=11 // pred_region
          _
        $region16: #{tpu_custom_call.1} parent=11 // pred_fallthru
          _
        // Predicated region
        $region17: #{tpu_custom_call.1} parent=11 // pred_check
          %p121 = pneg %p77
        $region18: #{tpu_custom_call.1} parent=11 // pred_check_branch
          %123 = sbr.rel (%p121) target = $region20
        $region19: #{tpu_custom_call.1} parent=11 // pred_region
          _
        $region20: #{tpu_custom_call.1} parent=11 // pred_fallthru
          _
      $region12: #{tpu_custom_call.1} parent=5 // pred_fallthru
        _
      %p124 = scmp.lt.s32.totalorder %s9, 2
      // Predicated region
      $region21: #{tpu_custom_call.1} parent=5 // pred_check
        %p125 = pneg %p124
      $region22: #{tpu_custom_call.1} parent=5 // pred_check_branch
        %127 = sbr.rel (%p125) target = $region24
      $region23: #{tpu_custom_call.1} parent=5 // pred_region
        // Predicated region
        $region25: #{tpu_custom_call.1} parent=23 // pred_check
          %p128 = pneg %p29
        $region26: #{tpu_custom_call.1} parent=23 // pred_check_branch
          %130 = sbr.rel (%p128) target = $region28
        $region27: #{tpu_custom_call.1} parent=23 // pred_region
          %s131 = smul.u32 13, %s9
          %s132 = ssub.s32 25, %s131
          %p133 = scmp.lt.s32.totalorder %s132, 13
          %s134 = scalar_select %p133, %s132, 13
          %s135 = smul.u32 128, %s134
          %p136 = scmp.lt.s32.totalorder %s131, 24
          %s137 = scalar_select %p136, %s131, 24
          %s138 = smul.addr %s137, 8
          %s139 = scalar_lea.vmem %s0, %s138
          %s140 = smul.u32 13, %s9
          %s141 = ssub.s32 25, %s140
          %p142 = scmp.lt.s32.totalorder %s141, 13
          %s143 = scalar_select %p142, %s141, 13
          %s144 = smul.u32 128, %s143
        $region28: #{tpu_custom_call.1} parent=23 // pred_fallthru
          _
      $region24: #{tpu_custom_call.1} parent=5 // pred_fallthru
        _
      %p145 = scmp.le.s32.totalorder 1, %s9
      %p146 = scmp.lt.s32.totalorder %s9, 3
      %p147 = pnand %p145, %p146
      %p148 = pneg %p147
      // Predicated region
      $region29: #{tpu_custom_call.1} parent=5 // pred_check
        _
      $region30: #{tpu_custom_call.1} parent=5 // pred_check_branch
        %150 = sbr.rel (%p147) target = $region32
      $region31: #{tpu_custom_call.1} parent=5 // pred_region
        %s151 = ssub.s32 %s9, 1
        %s152 = smul.u32 13, %s14
        %s153 = ssub.s32 25, %s152
        %p154 = scmp.lt.s32.totalorder %s153, 13
        %s155 = scalar_select %p154, %s153, 13
        %s156 = smul.u32 128, %s155
        %p157 = scmp.lt.s32.totalorder %s152, 24
        %s158 = scalar_select %p157, %s152, 24
        %s159 = smul.addr %s158, 8
        %s160 = scalar_lea.vmem %s0, %s159
        %p161 = pneg %p35
        %p162 = pneg %p32
        %p163 = pneg %p56
        %p164 = pneg %p53
        %p165 = pneg %p77
        %p166 = pneg %p74
        %p167 = pneg %p103
        %p168 = pneg %p100
        %s169 = sand.u32 %s90, 1
        %s170 = sand.u32 %s90, 1
        %s171 = smul.addr %s170, 104
        %s172 = scalar_lea.vmem [#allocation2], %s171
        %s173 = smul.u32 13, %s14
        %s174 = ssub.s32 25, %s173
        %p175 = scmp.lt.s32.totalorder %s174, 13
        %s176 = scalar_select %p175, %s174, 13
        %s177 = smul.u32 128, %s176
        %p178 = scmp.lt.s32.totalorder %s173, 24
        %s179 = scalar_select %p178, %s173, 24
        %s180 = smul.addr %s179, 8
        %s181 = scalar_lea.vmem %s0, %s180
        %s182 = smul.u32 13, %s14
        %s183 = ssub.s32 25, %s182
        %p184 = scmp.lt.s32.totalorder %s183, 13
        %s185 = scalar_select %p184, %s183, 13
        %s186 = smul.u32 128, %s185
        %s187 = smul.u32 13, %s14
        %s188 = ssub.s32 25, %s187
        %p189 = scmp.lt.s32.totalorder %s188, 13
        %s190 = scalar_select %p189, %s188, 13
        %s191 = smul.u32 128, %s190
        %v192 = vld [vmem:[%s181] sm:$0xff]
        %v193 = vld [vmem:[%s181 + $0x8] sm:$0xff]
        %v194 = vld [vmem:[%s181 + $0x10] sm:$0xff]
        %v195 = vld [vmem:[%s181 + $0x18] sm:$0xff]
        %v196 = vld [vmem:[%s181 + $0x20] sm:$0xff]
        %v197 = vld [vmem:[%s181 + $0x28] sm:$0xff]
        %v198 = vld [vmem:[%s181 + $0x30] sm:$0xff]
        %v199 = vld [vmem:[%s181 + $0x38] sm:$0xff]
        %v200 = vld [vmem:[%s181 + $0x40] sm:$0xff]
        %v201 = vld [vmem:[%s181 + $0x48] sm:$0xff]
        %v202 = vld [vmem:[%s181 + $0x50] sm:$0xff]
        %v203 = vld [vmem:[%s181 + $0x58] sm:$0xff]
        %v204 = vld [vmem:[%s181 + $0x60] sm:$0xff]
        %v205 = vld [vmem:[%s1] sm:$0xff]
        %v206 = vld [vmem:[%s1 + $0x8] sm:$0xff]
        %v207 = vld [vmem:[%s1 + $0x10] sm:$0xff]
        %v208 = vld [vmem:[%s1 + $0x18] sm:$0xff]
        %v209 = vld [vmem:[%s2] sm:$0x1]
        %v211 = vlaneseq
        %v212 = vshrl.u32 %v211, 7
        %v213 = vsub.s32 0, %v212
        %v214 = vrot.slane %v209, %v213
        %vm216 = vcmask 261120
        %v218 = vsel %vm216, %v192, 0
        %v221 = vsel %vm216, %v193, 0
        %v224 = vsel %vm216, %v194, 0
        %v227 = vsel %vm216, %v195, 0
        %v230 = vsel %vm216, %v196, 0
        %v233 = vsel %vm216, %v197, 0
        %v236 = vsel %vm216, %v198, 0
        %v239 = vsel %vm216, %v199, 0
        %v242 = vsel %vm216, %v200, 0
        %v245 = vsel %vm216, %v201, 0
        %v248 = vsel %vm216, %v202, 0
        %v251 = vsel %vm216, %v203, 0
        %v254 = vsel %vm216, %v204, 0
        %256 = vmatprep.subr.mxu0 0.0
        %257 = vmatpush1.msra.mxu0 0.0
        %258 = vmatprep.subr.mxu0 0.0
        %259 = vmatpush1.msra.mxu0 0.0
        %260 = vmatprep.subr.mxu0 0.0
        %261 = vmatpush1.msra.mxu0 0.0
        %262 = vmatprep.subr.mxu0 0.0
        %263 = vmatpush1.msra.mxu0 0.0
        %264 = vmatprep.subr.mxu0 0.0
        %265 = vmatpush1.msra.mxu0 0.0
        %266 = vmatprep.subr.mxu0 0.0
        %267 = vmatpush1.msra.mxu0 0.0
        %268 = vmatprep.subr.mxu0 0.0
        %269 = vmatpush1.msra.mxu0 0.0
        %270 = vmatprep.subr.mxu0 0.0
        %271 = vmatpush1.msra.mxu0 0.0
        %272 = vmatprep.subr.mxu0 0.0
        %273 = vmatpush1.msra.mxu0 0.0
        %274 = vmatprep.subr.mxu0 0.0
        %275 = vmatpush1.msra.mxu0 0.0
        %276 = vmatprep.subr.mxu0 0.0
        %277 = vmatpush1.msra.mxu0 0.0
        %278 = vmatprep.subr.mxu0 0.0
        %279 = vmatpush1.msra.mxu0 0.0
        %280 = vmatprep.subr.mxu0 0.0
        %281 = vmatpush1.msra.mxu0 %v208
        %282 = vmatprep.subr.mxu0 0.0
        %283 = vmatpush1.msra.mxu0 %v207
        %284 = vmatprep.subr.mxu0 0.0
        %285 = vmatpush1.msra.mxu0 %v206
        %286 = vmatprep.subr.mxu0 0.0
        %287 = vmatpush1.msra.mxu0 %v205
        %288 = vmatprep.subr.mxu0 0.0
        %289 = vmatpush2.msra.mxu0 0.0
        %290 = vmatprep.subr.mxu0 0.0
        %291 = vmatpush2.msra.mxu0 0.0
        %292 = vmatprep.subr.mxu0 0.0
        %293 = vmatpush2.msra.mxu0 0.0
        %294 = vmatprep.subr.mxu0 0.0
        %295 = vmatpush2.msra.mxu0 0.0
        %296 = vmatprep.subr.mxu0 0.0
        %297 = vmatpush2.msra.mxu0 0.0
        %298 = vmatprep.subr.mxu0 0.0
        %299 = vmatpush2.msra.mxu0 0.0
        %300 = vmatprep.subr.mxu0 0.0
        %301 = vmatpush2.msra.mxu0 0.0
        %302 = vmatprep.subr.mxu0 0.0
        %303 = vmatpush2.msra.mxu0 0.0
        %304 = vmatprep.subr.mxu0 0.0
        %305 = vmatpush2.msra.mxu0 0.0
        %306 = vmatprep.subr.mxu0 0.0
        %307 = vmatpush2.msra.mxu0 0.0
        %308 = vmatprep.subr.mxu0 0.0
        %309 = vmatpush2.msra.mxu0 0.0
        %310 = vmatprep.subr.mxu0 0.0
        %311 = vmatpush2.msra.mxu0 0.0
        %312 = vmatprep.subr.mxu0 0.0
        %313 = vmatpush2.msra.mxu0 0.0
        %314 = vmatprep.subr.mxu0 0.0
        %315 = vmatpush2.msra.mxu0 0.0
        %316 = vmatprep.subr.mxu0 0.0
        %317 = vmatpush2.msra.mxu0 0.0
        %318 = vmatprep.subr.mxu0 0.0
        %319 = vmatpush2.msra.mxu0 0.0
        %320 = vmatprep.mubr.f32.mxu0 0.0
        %321 = vmatmul.mubr.f32.gmra.mxu0 %v218
        %v322 = vpop.f32.mrf.mxu0
        %v323 = vadd.f32 %v214, %v322
        %v324 = vpop.f32.mrf.mxu0
        %325 = vmatprep.mubr.f32.mxu0 0.0
        %326 = vmatmul.mubr.f32.gmra.mxu0 %v221
        %v327 = vpop.f32.mrf.mxu0
        %v328 = vadd.f32 %v214, %v327
        %v329 = vpop.f32.mrf.mxu0
        %330 = vmatprep.mubr.f32.mxu0 0.0
        %331 = vmatmul.mubr.f32.gmra.mxu0 %v224
        %v332 = vpop.f32.mrf.mxu0
        %v333 = vadd.f32 %v214, %v332
        %v334 = vpop.f32.mrf.mxu0
        %335 = vmatprep.mubr.f32.mxu0 0.0
        %336 = vmatmul.mubr.f32.gmra.mxu0 %v227
        %v337 = vpop.f32.mrf.mxu0
        %v338 = vadd.f32 %v214, %v337
        %v339 = vpop.f32.mrf.mxu0
        %340 = vmatprep.mubr.f32.mxu0 0.0
        %341 = vmatmul.mubr.f32.gmra.mxu0 %v230
        %v342 = vpop.f32.mrf.mxu0
        %v343 = vadd.f32 %v214, %v342
        %v344 = vpop.f32.mrf.mxu0
        %345 = vmatprep.mubr.f32.mxu0 0.0
        %346 = vmatmul.mubr.f32.gmra.mxu0 %v233
        %v347 = vpop.f32.mrf.mxu0
        %v348 = vadd.f32 %v214, %v347
        %v349 = vpop.f32.mrf.mxu0
        %350 = vmatprep.mubr.f32.mxu0 0.0
        %351 = vmatmul.mubr.f32.gmra.mxu0 %v236
        %v352 = vpop.f32.mrf.mxu0
        %v353 = vadd.f32 %v214, %v352
        %v354 = vpop.f32.mrf.mxu0
        %355 = vmatprep.mubr.f32.mxu0 0.0
        %356 = vmatmul.mubr.f32.gmra.mxu0 %v239
        %v357 = vpop.f32.mrf.mxu0
        %v358 = vadd.f32 %v214, %v357
        %v359 = vpop.f32.mrf.mxu0
        %360 = vmatprep.mubr.f32.mxu0 0.0
        %361 = vmatmul.mubr.f32.gmra.mxu0 %v242
        %v362 = vpop.f32.mrf.mxu0
        %v363 = vadd.f32 %v214, %v362
        %v364 = vpop.f32.mrf.mxu0
        %365 = vmatprep.mubr.f32.mxu0 0.0
        %366 = vmatmul.mubr.f32.gmra.mxu0 %v245
        %v367 = vpop.f32.mrf.mxu0
        %v368 = vadd.f32 %v214, %v367
        %v369 = vpop.f32.mrf.mxu0
        %370 = vmatprep.mubr.f32.mxu0 0.0
        %371 = vmatmul.mubr.f32.gmra.mxu0 %v248
        %v372 = vpop.f32.mrf.mxu0
        %v373 = vadd.f32 %v214, %v372
        %v374 = vpop.f32.mrf.mxu0
        %375 = vmatprep.mubr.f32.mxu0 0.0
        %376 = vmatmul.mubr.f32.gmra.mxu0 %v251
        %v377 = vpop.f32.mrf.mxu0
        %v378 = vadd.f32 %v214, %v377
        %v379 = vpop.f32.mrf.mxu0
        %380 = vmatprep.mubr.f32.mxu0 0.0
        %381 = vmatmul.mubr.f32.gmra.mxu0 %v254
        %v382 = vpop.f32.mrf.mxu0
        %v383 = vadd.f32 %v214, %v382
        %v384 = vpop.f32.mrf.mxu0
        %385 = vdwg.mxu0
        %vm386 = vcmask 130048
        %387 = vst.msk [vmem:[%s172] sm:$0xff] %vm386, %v323
        %388 = vst.msk [vmem:[%s172 + $0x8] sm:$0xff] %vm386, %v328
        %389 = vst.msk [vmem:[%s172 + $0x10] sm:$0xff] %vm386, %v333
        %390 = vst.msk [vmem:[%s172 + $0x18] sm:$0xff] %vm386, %v338
        %391 = vst.msk [vmem:[%s172 + $0x20] sm:$0xff] %vm386, %v343
        %392 = vst.msk [vmem:[%s172 + $0x28] sm:$0xff] %vm386, %v348
        %393 = vst.msk [vmem:[%s172 + $0x30] sm:$0xff] %vm386, %v353
        %394 = vst.msk [vmem:[%s172 + $0x38] sm:$0xff] %vm386, %v358
        %395 = vst.msk [vmem:[%s172 + $0x40] sm:$0xff] %vm386, %v363
        %396 = vst.msk [vmem:[%s172 + $0x48] sm:$0xff] %vm386, %v368
        %397 = vst.msk [vmem:[%s172 + $0x50] sm:$0xff] %vm386, %v373
        %398 = vst.msk [vmem:[%s172 + $0x58] sm:$0xff] %vm386, %v378
        %399 = vst.msk [vmem:[%s172 + $0x60] sm:$0xff] %vm386, %v383
        %s400 = sand.u32 %s90, 1
        %s401 = sand.u32 %s90, 1
        %s402 = smul.addr %s401, 104
        %s403 = scalar_lea.vmem [#allocation2], %s402
        // Predicated region
        $region33: #{tpu_custom_call.1} parent=31 // pred_check
          %p404 = pneg %p100
        $region34: #{tpu_custom_call.1} parent=31 // pred_check_branch
          %406 = sbr.rel (%p404) target = $region36
        $region35: #{tpu_custom_call.1} parent=31 // pred_region
          %s407 = smul.u32 13, %s14
          %s408 = ssub.s32 25, %s407
          %p409 = scmp.lt.s32.totalorder %s408, 13
          %s410 = scalar_select %p409, %s408, 13
          %s411 = smul.u32 128, %s410
          %p412 = scmp.ne.s32.totalorder 0, %s411
          %s413 = smul.addr %s407, 8
          %s414 = scalar_lea.vmem %s3, %s413
          // Predicated region
          $region37: #{tpu_custom_call.1} parent=35 // pred_check
            %p415 = pneg %p412
          $region38: #{tpu_custom_call.1} parent=35 // pred_check_branch
            %417 = sbr.rel (%p415) target = $region40
          $region39: #{tpu_custom_call.1} parent=35 // pred_region
            // Predicated region
            $region41: #{tpu_custom_call.1} parent=39 // pred_check
              _
            $region42: #{tpu_custom_call.1} parent=39 // pred_check_branch
              %419 = sbr.rel (0) target = $region44
            $region43: #{tpu_custom_call.1} parent=39 // pred_region
              // Predicated region
              $region63: #{tpu_custom_call.1} parent=43 // pred_check
                _
              $region64: #{tpu_custom_call.1} parent=43 // pred_check_branch
                %494 = sbr.rel (0) target = $region66
              $region65: #{tpu_custom_call.1} parent=43 // pred_region
                %s495 = sdiv.u32.pop %s410, 13
                %s496 = srem.u32.pop %s410, 13
                // While loop
                $region67: #{tpu_custom_call.1} parent=65 // loop_pre_header
                  _
                $region68: #{tpu_custom_call.1} parent=65 // loop_header
                  %s498 = sphi 0, %s500
                  %p499 = scmp.ge.s32.totalorder %s498, %s495
                  %s503 = sphi 0, %s534
                  %s504 = sphi %s403, %s537
                  %s505 = sphi %s414, %s538
                $region69: #{tpu_custom_call.1} parent=65 // loop_header_branch
                  %502 = sbr.rel (%p499) target = $region73
                $region70: #{tpu_custom_call.1} parent=65 // loop_body
                  %v506 = vld [vmem:[%s504] sm:$0xff]
                  %507 = vst [vmem:[%s505] sm:$0xff] %v506
                  %v508 = vld [vmem:[%s504 + $0x8] sm:$0xff]
                  %509 = vst [vmem:[%s505 + $0x8] sm:$0xff] %v508
                  %v510 = vld [vmem:[%s504 + $0x10] sm:$0xff]
                  %511 = vst [vmem:[%s505 + $0x10] sm:$0xff] %v510
                  %v512 = vld [vmem:[%s504 + $0x18] sm:$0xff]
                  %513 = vst [vmem:[%s505 + $0x18] sm:$0xff] %v512
                  %v514 = vld [vmem:[%s504 + $0x20] sm:$0xff]
                  %515 = vst [vmem:[%s505 + $0x20] sm:$0xff] %v514
                  %v516 = vld [vmem:[%s504 + $0x28] sm:$0xff]
                  %517 = vst [vmem:[%s505 + $0x28] sm:$0xff] %v516
                  %v518 = vld [vmem:[%s504 + $0x30] sm:$0xff]
                  %519 = vst [vmem:[%s505 + $0x30] sm:$0xff] %v518
                  %v520 = vld [vmem:[%s504 + $0x38] sm:$0xff]
                  %521 = vst [vmem:[%s505 + $0x38] sm:$0xff] %v520
                  %v522 = vld [vmem:[%s504 + $0x40] sm:$0xff]
                  %523 = vst [vmem:[%s505 + $0x40] sm:$0xff] %v522
                  %v524 = vld [vmem:[%s504 + $0x48] sm:$0xff]
                  %525 = vst [vmem:[%s505 + $0x48] sm:$0xff] %v524
                  %v526 = vld [vmem:[%s504 + $0x50] sm:$0xff]
                  %527 = vst [vmem:[%s505 + $0x50] sm:$0xff] %v526
                  %v528 = vld [vmem:[%s504 + $0x58] sm:$0xff]
                  %529 = vst [vmem:[%s505 + $0x58] sm:$0xff] %v528
                  %v530 = vld [vmem:[%s504 + $0x60] sm:$0xff]
                  %531 = vst [vmem:[%s505 + $0x60] sm:$0xff] %v530
                  %s532 = sadd.s32 1, %s503
                  %p533 = scmp.ge.s32.totalorder %s532, %s495
                  %s534 = scalar_select %p533, 0, %s532
                  %s535 = smul.u32 %s534, 104
                  %s536 = smul.u32 %s534, 104
                  %s537 = scalar_lea.vmem %s403, %s535 [#allocation2]
                  %s538 = scalar_lea.vmem %s414, %s536
                $region71: #{tpu_custom_call.1} parent=65 // loop_footer
                  %s500 = sadd.s32 %s498, 1
                $region72: #{tpu_custom_call.1} parent=65 // loop_footer_branch
                  %497 = sbr.rel target = $region68
                $region73: #{tpu_custom_call.1} parent=65 // loop_exit
                  _
                %s539 = sdiv.u32.pop %s410, 13
                %s540 = srem.u32.pop %s410, 13
                %s541 = smul.u32 %s539, 13
                %s542 = smul.u32 8, %s541
                %s543 = scalar_lea.vmem %s403, %s542 [#allocation2]
                %s544 = smul.u32 8, %s541
                %s545 = scalar_lea.vmem %s414, %s544
                // While loop
                $region74: #{tpu_custom_call.1} parent=65 // loop_pre_header
                  _
                $region75: #{tpu_custom_call.1} parent=65 // loop_header
                  %s547 = sphi 0, %s549
                  %p548 = scmp.ge.s32.totalorder %s547, %s540
                  %s552 = sphi 0, %s559
                  %s553 = sphi %s543, %s562
                  %s554 = sphi %s545, %s563
                $region76: #{tpu_custom_call.1} parent=65 // loop_header_branch
                  %551 = sbr.rel (%p548) target = $region80
                $region77: #{tpu_custom_call.1} parent=65 // loop_body
                  %v555 = vld [vmem:[%s553] sm:$0xff]
                  %556 = vst [vmem:[%s554] sm:$0xff] %v555
                  %s557 = sadd.s32 1, %s552
                  %p558 = scmp.ge.s32.totalorder %s557, %s540
                  %s559 = scalar_select %p558, 0, %s557
                  %s560 = smul.u32 %s559, 8
                  %s561 = smul.u32 %s559, 8
                  %s562 = scalar_lea.vmem %s543, %s560 [#allocation2]
                  %s563 = scalar_lea.vmem %s545, %s561
                $region78: #{tpu_custom_call.1} parent=65 // loop_footer
                  %s549 = sadd.s32 %s547, 1
                $region79: #{tpu_custom_call.1} parent=65 // loop_footer_branch
                  %546 = sbr.rel target = $region75
                $region80: #{tpu_custom_call.1} parent=65 // loop_exit
                  _
              $region66: #{tpu_custom_call.1} parent=43 // pred_fallthru
                _
              // Predicated region
              $region81: #{tpu_custom_call.1} parent=43 // pred_check
                _
              $region82: #{tpu_custom_call.1} parent=43 // pred_check_branch
                %565 = sbr.rel target = $region84
              $region83: #{tpu_custom_call.1} parent=43 // pred_region
                _
              $region84: #{tpu_custom_call.1} parent=43 // pred_fallthru
                _
            $region44: #{tpu_custom_call.1} parent=39 // pred_fallthru
              _
            // Predicated region
            $region45: #{tpu_custom_call.1} parent=39 // pred_check
              _
            $region46: #{tpu_custom_call.1} parent=39 // pred_check_branch
              %421 = sbr.rel target = $region48
            $region47: #{tpu_custom_call.1} parent=39 // pred_region
              %s423 = ssub.s32 256, 1
              %s424 = sdiv.u32.pop %s410, 13
              %s425 = srem.u32.pop %s410, 13
              // While loop
              $region49: #{tpu_custom_call.1} parent=47 // loop_pre_header
                _
              $region50: #{tpu_custom_call.1} parent=47 // loop_header
                %s427 = sphi 0, %s429
                %p428 = scmp.ge.s32.totalorder %s427, %s424
                %s432 = sphi 0, %s463
                %s433 = sphi %s403, %s466
                %s434 = sphi %s414, %s467
              $region51: #{tpu_custom_call.1} parent=47 // loop_header_branch
                %431 = sbr.rel (%p428) target = $region55
              $region52: #{tpu_custom_call.1} parent=47 // loop_body
                %v435 = vld [vmem:[%s433] sm:%s423]
                %436 = vst [vmem:[%s434] sm:%s423] %v435
                %v437 = vld [vmem:[%s433 + $0x8] sm:%s423]
                %438 = vst [vmem:[%s434 + $0x8] sm:%s423] %v437
                %v439 = vld [vmem:[%s433 + $0x10] sm:%s423]
                %440 = vst [vmem:[%s434 + $0x10] sm:%s423] %v439
                %v441 = vld [vmem:[%s433 + $0x18] sm:%s423]
                %442 = vst [vmem:[%s434 + $0x18] sm:%s423] %v441
                %v443 = vld [vmem:[%s433 + $0x20] sm:%s423]
                %444 = vst [vmem:[%s434 + $0x20] sm:%s423] %v443
                %v445 = vld [vmem:[%s433 + $0x28] sm:%s423]
                %446 = vst [vmem:[%s434 + $0x28] sm:%s423] %v445
                %v447 = vld [vmem:[%s433 + $0x30] sm:%s423]
                %448 = vst [vmem:[%s434 + $0x30] sm:%s423] %v447
                %v449 = vld [vmem:[%s433 + $0x38] sm:%s423]
                %450 = vst [vmem:[%s434 + $0x38] sm:%s423] %v449
                %v451 = vld [vmem:[%s433 + $0x40] sm:%s423]
                %452 = vst [vmem:[%s434 + $0x40] sm:%s423] %v451
                %v453 = vld [vmem:[%s433 + $0x48] sm:%s423]
                %454 = vst [vmem:[%s434 + $0x48] sm:%s423] %v453
                %v455 = vld [vmem:[%s433 + $0x50] sm:%s423]
                %456 = vst [vmem:[%s434 + $0x50] sm:%s423] %v455
                %v457 = vld [vmem:[%s433 + $0x58] sm:%s423]
                %458 = vst [vmem:[%s434 + $0x58] sm:%s423] %v457
                %v459 = vld [vmem:[%s433 + $0x60] sm:%s423]
                %460 = vst [vmem:[%s434 + $0x60] sm:%s423] %v459
                %s461 = sadd.s32 1, %s432
                %p462 = scmp.ge.s32.totalorder %s461, %s424
                %s463 = scalar_select %p462, 0, %s461
                %s464 = smul.u32 %s463, 104
                %s465 = smul.u32 %s463, 104
                %s466 = scalar_lea.vmem %s403, %s464 [#allocation2]
                %s467 = scalar_lea.vmem %s414, %s465
              $region53: #{tpu_custom_call.1} parent=47 // loop_footer
                %s429 = sadd.s32 %s427, 1
              $region54: #{tpu_custom_call.1} parent=47 // loop_footer_branch
                %426 = sbr.rel target = $region50
              $region55: #{tpu_custom_call.1} parent=47 // loop_exit
                _
              %s468 = sdiv.u32.pop %s410, 13
              %s469 = srem.u32.pop %s410, 13
              %s470 = smul.u32 %s468, 13
              %s471 = smul.u32 8, %s470
              %s472 = scalar_lea.vmem %s403, %s471 [#allocation2]
              %s473 = smul.u32 8, %s470
              %s474 = scalar_lea.vmem %s414, %s473
              // While loop
              $region56: #{tpu_custom_call.1} parent=47 // loop_pre_header
                _
              $region57: #{tpu_custom_call.1} parent=47 // loop_header
                %s476 = sphi 0, %s478
                %p477 = scmp.ge.s32.totalorder %s476, %s469
                %s481 = sphi 0, %s488
                %s482 = sphi %s472, %s491
                %s483 = sphi %s474, %s492
              $region58: #{tpu_custom_call.1} parent=47 // loop_header_branch
                %480 = sbr.rel (%p477) target = $region62
              $region59: #{tpu_custom_call.1} parent=47 // loop_body
                %v484 = vld [vmem:[%s482] sm:%s423]
                %485 = vst [vmem:[%s483] sm:%s423] %v484
                %s486 = sadd.s32 1, %s481
                %p487 = scmp.ge.s32.totalorder %s486, %s469
                %s488 = scalar_select %p487, 0, %s486
                %s489 = smul.u32 %s488, 8
                %s490 = smul.u32 %s488, 8
                %s491 = scalar_lea.vmem %s472, %s489 [#allocation2]
                %s492 = scalar_lea.vmem %s474, %s490
              $region60: #{tpu_custom_call.1} parent=47 // loop_footer
                %s478 = sadd.s32 %s476, 1
              $region61: #{tpu_custom_call.1} parent=47 // loop_footer_branch
                %475 = sbr.rel target = $region57
              $region62: #{tpu_custom_call.1} parent=47 // loop_exit
                _
            $region48: #{tpu_custom_call.1} parent=39 // pred_fallthru
              _
          $region40: #{tpu_custom_call.1} parent=35 // pred_fallthru
            _
          %566 = vnop
        $region36: #{tpu_custom_call.1} parent=31 // pred_fallthru
          _
      $region32: #{tpu_custom_call.1} parent=5 // pred_fallthru
        _
      %p567 = scmp.le.s32.totalorder 2, %s9
      // Predicated region
      $region85: #{tpu_custom_call.1} parent=5 // pred_check
        %p568 = pneg %p567
      $region86: #{tpu_custom_call.1} parent=5 // pred_check_branch
        %570 = sbr.rel (%p568) target = $region88
      $region87: #{tpu_custom_call.1} parent=5 // pred_region
        %s571 = ssub.s32 %s9, 2
        // Predicated region
        $region89: #{tpu_custom_call.1} parent=87 // pred_check
          %p572 = pneg %p106
        $region90: #{tpu_custom_call.1} parent=87 // pred_check_branch
          %574 = sbr.rel (%p572) target = $region92
        $region91: #{tpu_custom_call.1} parent=87 // pred_region
          %s575 = sand.u32 %s91, 1
          %s576 = sand.u32 %s91, 1
          %s577 = smul.addr %s576, 104
          %s578 = scalar_lea.vmem [#allocation2], %s577
        $region92: #{tpu_custom_call.1} parent=87 // pred_fallthru
          _
      $region88: #{tpu_custom_call.1} parent=5 // pred_fallthru
        _
    $region6: #{tpu_custom_call.1} parent=1 // loop_footer
      %s13 = sadd.s32 1, %s9
    $region7: #{tpu_custom_call.1} parent=1 // loop_footer_branch
      %8 = sbr.rel target = $region3
    $region8: #{tpu_custom_call.1} parent=1 // loop_exit
      _

</llo_original>
